<compile_context>
chip_gen: v6e
topology: v6e:2x2x1
jax: 0.10.0
libtpu: 0.0.40
codegen_flags: <defaults>
</compile_context>

<pallas_src>
import functools

import jax
import jax.numpy as jnp
from jax.experimental import pallas as pl
from jax.experimental.pallas import tpu as pltpu

_EPS = 1e-4                 # the +0.0001 inside torch.log(softmax(...) + 0.0001)
_PALLAS_MIN_ELEMS = 4096    # below this, a fused XLA graph beats a pallas_call launch


def _softmax_kl_reference(reconstructed: jax.Array, original: jax.Array) -> jax.Array:
    """Pure-JAX reference mirroring the PyTorch module (also the tiny-shape fast path)."""
    p = jax.nn.softmax(original.astype(jnp.float32), axis=1)
    q = jax.nn.softmax(reconstructed.astype(jnp.float32), axis=1)
    log_q = jnp.log(q + _EPS)
    elem = jnp.where(p > 0.0, p * (jnp.log(p) - log_q), 0.0)
    return jnp.sum(elem) / jnp.float32(original.shape[0])


def _kl_kernel(rec_ref, org_ref, out_ref, *, transpose_classes: bool):
    """One grid step: per-row KL contributions of one (tile_b, C) block.

    If transpose_classes, the block is transposed in-kernel so the (small) class axis
    sits on sublanes and the batch axis fills the 128 lanes; otherwise class stays on
    the lane axis.
    """
    rec = rec_ref[...].astype(jnp.float32)
    org = org_ref[...].astype(jnp.float32)
    if transpose_classes:
        rec = rec.T                       # (C, tile_b): class on sublanes, batch on lanes
        org = org.T
        axis = 0
    else:
        axis = -1

    # Target p = softmax(org): keep un-normalized pieces, fold 1/p_sum into the row sum.
    org_s = org - jnp.max(org, axis=axis, keepdims=True)
    p_e = jnp.exp(org_s)
    p_sum = jnp.sum(p_e, axis=axis, keepdims=True)
    log_p = org_s - jnp.log(p_sum)                       # always finite

    # Reconstructed q = softmax(rec); log(q + eps) folded so no division is needed:
    #   log(q_e/q_sum + eps) == log(q_e + eps*q_sum) - log(q_sum)
    rec_s = rec - jnp.max(rec, axis=axis, keepdims=True)
    q_e = jnp.exp(rec_s)
    q_sum = jnp.sum(q_e, axis=axis, keepdims=True)
    log_q = jnp.log(q_e + _EPS * q_sum) - jnp.log(q_sum)

    # Per-row KL: (1/p_sum) * sum_c p_e * (log_p - log_q).  No p>0 guard needed:
    # when p_e underflows to 0 the term is exactly 0 (log_p, log_q are finite).
    inner = jnp.sum(p_e * (log_p - log_q), axis=axis, keepdims=True)
    out_ref[...] = inner / p_sum


def _vmem_capacity_bytes() -> int:
    try:
        cap = int(pltpu.get_tpu_info().vmem_capacity_bytes)
    except Exception:
        cap = 64 * 1024 * 1024            # conservative (v7x-sized) default
    return max(32 << 20, min(cap, 128 << 20))


def _pick_tile(B: int, C: int, unit: int, max_tile_elems: int, min_blocks: int) -> int:
    """Batch-tile: multiple of `unit`, within the VMEM element budget, and small enough
    to give >= min_blocks grid steps when B allows it.  Ragged tails are handled by the
    cdiv grid + Pallas boundary masking, so tile need not divide B."""
    if B <= unit:
        return B                          # single block == full dim (always legal)
    budget = max(unit, ((max_tile_elems // max(C, 1)) // unit) * unit)
    target = max(unit, pl.cdiv(pl.cdiv(B, min_blocks), unit) * unit)
    tile = min(budget, target)
    if tile >= B:
        return B
    return tile


def stable_kl_div_loss(reconstructed: jax.Array, original: jax.Array) -> jax.Array:
    """Pallas implementation of StableKLDivLoss.forward for (B, C) logits."""
    assert reconstructed.shape == original.shape
    assert reconstructed.ndim == 2
    B, C = reconstructed.shape

    if B * C < _PALLAS_MIN_ELEMS:
        # Launch + epilogue would dominate; use the fused XLA graph instead.
        return _softmax_kl_reference(reconstructed, original)

    itemsize = max(jnp.dtype(reconstructed.dtype).itemsize,
                   jnp.dtype(original.dtype).itemsize)

    # Generation-aware VMEM budget: ~half of physical VMEM for
    # (2 inputs x 2 pipeline buffers) + ~8 block-sized f32 in-kernel temporaries.
    vmem_cap = _vmem_capacity_bytes()
    bytes_per_elem = 4 * itemsize + 32
    max_tile_elems = max(8 * 128, (vmem_cap // 2) // bytes_per_elem)

    # Small class counts: transpose in-kernel so the batch axis fills the 128 lanes.
    transpose_classes = (C < 128) and (C % 8 == 0)
    unit = 128 if transpose_classes else (16 if itemsize < 4 else 8)

    tile = _pick_tile(B, C, unit, max_tile_elems, min_blocks=4)
    n_blocks = pl.cdiv(B, tile)

    in_spec = pl.BlockSpec((tile, C), lambda i: (i, 0))
    if transpose_classes:
        out_shape = jax.ShapeDtypeStruct((1, B), jnp.float32)   # per-row KL, lane-major
        out_spec = pl.BlockSpec((1, tile), lambda i: (0, i))
    else:
        out_shape = jax.ShapeDtypeStruct((B, 1), jnp.float32)   # per-row KL, sublane-major
        out_spec = pl.BlockSpec((tile, 1), lambda i: (i, 0))

    tile_elems = tile * C
    footprint = 4 * tile_elems * itemsize + 10 * tile_elems * 4 + (2 << 20)
    vmem_limit = int(min(vmem_cap - (4 << 20), max(footprint, 32 << 20)))

    rows = pl.pallas_call(
        functools.partial(_kl_kernel, transpose_classes=transpose_classes),
        out_shape=out_shape,
        grid_spec=pltpu.PrefetchScalarGridSpec(
            num_scalar_prefetch=0,
            grid=(n_blocks,),
            in_specs=[in_spec, in_spec],
            out_specs=out_spec,
        ),
        compiler_params=pltpu.CompilerParams(
            dimension_semantics=("parallel",),
            vmem_limit_bytes=vmem_limit,
        ),
        cost_estimate=pl.CostEstimate(
            flops=int(10 * B * C),
            transcendentals=int(3 * B * C),
            bytes_accessed=int(2 * B * C * itemsize + B * 4),
        ),
    )(reconstructed, original)

    # 'batchmean' reduction: sum of per-row KL divided by the batch size.
    return jnp.sum(rows) / jnp.float32(B)


if __name__ == "__main__":
    key = jax.random.PRNGKey(0)
    keys = jax.random.split(key, 10)

    def check(rec, org):
        got = jax.block_until_ready(stable_kl_div_loss(rec, org))
        want = jax.block_until_ready(_softmax_kl_reference(rec, org))
        assert bool(jnp.isfinite(got)), got
        assert jnp.allclose(got, want, rtol=1e-4, atol=1e-6), (got, want)
        return got

    # 1) Tiny demo shape (batch=16 logits over 32 classes) -> fused fallback path.
    check(jax.random.normal(keys[0], (16, 32), dtype=jnp.float32),
          jax.random.normal(keys[1], (16, 32), dtype=jnp.float32))

    # 2) Small class count -> Pallas path with in-kernel class transpose, multi-block grid.
    check(jax.random.normal(keys[2], (512, 32), dtype=jnp.float32),
          jax.random.normal(keys[3], (512, 32), dtype=jnp.float32))

    # 3) Lane-sized class axis -> natural-layout Pallas path, multi-block grid.
    check(jax.random.normal(keys[4], (256, 256), dtype=jnp.float32),
          jax.random.normal(keys[5], (256, 256), dtype=jnp.float32))

    # 4) Ragged batch (tile does not divide B) on both layouts.
    check(jax.random.normal(keys[6], (200, 32), dtype=jnp.float32),
          jax.random.normal(keys[7], (200, 32), dtype=jnp.float32))
    check(jax.random.normal(keys[6], (200, 160), dtype=jnp.float32),
          jax.random.normal(keys[7], (200, 160), dtype=jnp.float32))

    # 5) bf16 logits (math stays f32 in-kernel; larger element-count tiles).
    check(jax.random.normal(keys[8], (512, 256), dtype=jnp.bfloat16),
          jax.random.normal(keys[9], (512, 256), dtype=jnp.bfloat16))

    print("KERNEL_OK")
</pallas_src>

<mosaic_0001>
module attributes {stable_mosaic.version = 11 : i64} {
  func.func @_kl_kernel(%arg0: i32, %arg1: memref<128x32xf32, #tpu.memory_space<vmem>>, %arg2: memref<128x32xf32, #tpu.memory_space<vmem>>, %arg3: memref<1x128xf32, #tpu.memory_space<vmem>>) attributes {dimension_semantics = [#tpu.dimension_semantics<parallel>], iteration_bounds = array<i64: 4>, scalar_prefetch = 0 : i64, scratch_operands = 0 : i64, tpu.core_type = #tpu.core_type<tc>, window_params = [{transform_indices = @transform_0, window_bounds = array<i64: 128, 32>}, {transform_indices = @transform_1, window_bounds = array<i64: 128, 32>}, {transform_indices = @transform_2, window_bounds = array<i64: 1, 128>}]} {
    %c0 = arith.constant 0 : index
    %c0_0 = arith.constant 0 : index
    %0 = vector.load %arg1[%c0, %c0_0] : memref<128x32xf32, #tpu.memory_space<vmem>>, vector<128x32xf32>
    %c0_1 = arith.constant 0 : index
    %c0_2 = arith.constant 0 : index
    %1 = vector.load %arg2[%c0_1, %c0_2] : memref<128x32xf32, #tpu.memory_space<vmem>>, vector<128x32xf32>
    %2 = tpu.transpose %0, [1, 0] : vector<128x32xf32> -> vector<32x128xf32>
    %3 = tpu.transpose %1, [1, 0] : vector<128x32xf32> -> vector<32x128xf32>
    %cst = arith.constant dense<0xFF800000> : vector<128xf32>
    %4 = vector.multi_reduction <maximumf>, %3, %cst [0] : vector<32x128xf32> to vector<128xf32>
    %5 = vector.shape_cast %4 : vector<128xf32> to vector<1x128xf32>
    %6 = vector.broadcast %5 : vector<1x128xf32> to vector<32x128xf32>
    %7 = arith.subf %3, %6 : vector<32x128xf32>
    %8 = math.exp %7 : vector<32x128xf32>
    %cst_3 = arith.constant dense<0.000000e+00> : vector<128xf32>
    %9 = vector.multi_reduction <add>, %8, %cst_3 [0] : vector<32x128xf32> to vector<128xf32>
    %10 = vector.shape_cast %9 : vector<128xf32> to vector<1x128xf32>
    %11 = math.log %10 : vector<1x128xf32>
    %12 = vector.broadcast %11 : vector<1x128xf32> to vector<32x128xf32>
    %13 = arith.subf %7, %12 : vector<32x128xf32>
    %cst_4 = arith.constant dense<0xFF800000> : vector<128xf32>
    %14 = vector.multi_reduction <maximumf>, %2, %cst_4 [0] : vector<32x128xf32> to vector<128xf32>
    %15 = vector.shape_cast %14 : vector<128xf32> to vector<1x128xf32>
    %16 = vector.broadcast %15 : vector<1x128xf32> to vector<32x128xf32>
    %17 = arith.subf %2, %16 : vector<32x128xf32>
    %18 = math.exp %17 : vector<32x128xf32>
    %cst_5 = arith.constant dense<0.000000e+00> : vector<128xf32>
    %19 = vector.multi_reduction <add>, %18, %cst_5 [0] : vector<32x128xf32> to vector<128xf32>
    %20 = vector.shape_cast %19 : vector<128xf32> to vector<1x128xf32>
    %cst_6 = arith.constant 9.99999974E-5 : f32
    %21 = vector.broadcast %cst_6 : f32 to vector<1x128xf32>
    %22 = arith.mulf %21, %20 : vector<1x128xf32>
    %23 = vector.broadcast %22 : vector<1x128xf32> to vector<32x128xf32>
    %24 = arith.addf %18, %23 : vector<32x128xf32>
    %25 = math.log %24 : vector<32x128xf32>
    %26 = math.log %20 : vector<1x128xf32>
    %27 = vector.broadcast %26 : vector<1x128xf32> to vector<32x128xf32>
    %28 = arith.subf %25, %27 : vector<32x128xf32>
    %29 = arith.subf %13, %28 : vector<32x128xf32>
    %30 = arith.mulf %8, %29 : vector<32x128xf32>
    %cst_7 = arith.constant dense<0.000000e+00> : vector<128xf32>
    %31 = vector.multi_reduction <add>, %30, %cst_7 [0] : vector<32x128xf32> to vector<128xf32>
    %32 = vector.shape_cast %31 : vector<128xf32> to vector<1x128xf32>
    %33 = arith.divf %32, %10 : vector<1x128xf32>
    %c0_8 = arith.constant 0 : index
    %c0_9 = arith.constant 0 : index
    %34 = vector.load %arg3[%c0_8, %c0_9] : memref<1x128xf32, #tpu.memory_space<vmem>>, vector<1x128xf32>
    tpu.vector_store %arg3[%c0_8, %c0_9], %33 {strides = array<i32>} : memref<1x128xf32, #tpu.memory_space<vmem>>, vector<1x128xf32>,
    return
  }
  func.func @transform_0(%arg0: i32) -> (i32, i32) {
    %c0_i32 = arith.constant 0 : i32
    %c0_i32_0 = arith.constant 0 : i32
    return %arg0, %c0_i32 : i32, i32
  }
  func.func @transform_1(%arg0: i32) -> (i32, i32) {
    %c0_i32 = arith.constant 0 : i32
    %c0_i32_0 = arith.constant 0 : i32
    return %arg0, %c0_i32 : i32, i32
  }
  func.func @transform_2(%arg0: i32) -> (i32, i32) {
    %c0_i32 = arith.constant 0 : i32
    %c0_i32_0 = arith.constant 0 : i32
    return %c0_i32, %arg0 : i32, i32
  }
}

</mosaic_0001>

<llo_original>
// kernel: tpu_custom_call.1
$region0: #{tpu_custom_call.1}
  #allocation0 [shape = 'u32[]', space=smem, size = 0x4, offset = 0x4, fixed_abs, tag = 'smem constant byte address 0x4 - core index']
  #allocation1 [shape = 'u32[144,128]{1,0:T(1,128)}', space=vmem, size = 0x12000, scoped, tag = 'internal scratch']
  %s0 = inlined_call_operand.vmem [shape: f32[512,32], index: 0, kind: input, shape index: {}]
  %s1 = inlined_call_operand.vmem [shape: f32[512,32], index: 1, kind: input, shape index: {}]
  %s2 = inlined_call_operand.hbm [shape: f32[1,512], index: 2, kind: output, shape index: {}]
  %s3 = sld [smem:[#allocation0]]
  $region41: #{tpu_custom_call.1} parent=0
    _
  %s5 = ssub.s32 1, %s3
  %s6 = scalar_select 0, %s5, %s3
  $region1: #{tpu_custom_call.1} parent=0
    #allocation2 [shape = 'u8[1024]{0}', space=vmem, size = 0x400, scoped, tag = 'output window, operand 0']
    #allocation3 [shape = 's32[2]{0}', space=sflag, size = 0x8, scoped, tag = 'scoped memory for tpu_custom_call.1']
    %7 = vsyncpa [#allocation3], 0
    %s8 = scalar_lea.sflag [#allocation3], 1
    %9 = vsyncpa %s8, 0
    loop: start=0, step=1, limit=6
    $region2: #{tpu_custom_call.1} parent=1 // loop_pre_header
      _
    $region3: #{tpu_custom_call.1} parent=1 // loop_header
      %s11 = sphi 0, %s15
      %p12 = scmp.ge.s32.totalorder %s11, 6
      %s21 = sphi 0, %s23
      %s24 = sphi 0, %s21
      %s25 = sphi 0, %s24
      %s41 = sphi 0, %s25
      %s47 = sphi 0, %s49
      %s50 = sphi 0, %s47
      %s51 = sphi 0, %s50
      %s67 = sphi 0, %s51
      %s73 = sphi 0, %s75
      %s76 = sphi 0, %s73
      %s77 = sphi 0, %s76
      %s93 = sphi 0, %s77
    $region4: #{tpu_custom_call.1} parent=1 // loop_header_branch
      %14 = sbr.rel (%p12) target = $region8
    $region5: #{tpu_custom_call.1} parent=1 // loop_body
      %s16 = ssub.s32 %s11, 1
      %s17 = ssub.s32 %s11, 2
      %s18 = sadd.s32 %s11, 1
      %s19 = ssub.s32 %s11, %s18
      %p20 = scmp.eq.s32.totalorder %s19, 0
      %s22 = sadd.s32 %s21, 1
      %s23 = scalar_select %p20, %s21, %s22
      %p26 = pneg %p20
      %p27 = scmp.eq.s32.totalorder %s11, 3
      %p28 = por %p26, %p27
      %p29 = scmp.ne.s32.totalorder %s21, %s24
      %p30 = scmp.eq.s32.totalorder %s11, 0
      %p31 = por %p29, %p30
      %p32 = scmp.ne.s32.totalorder %s21, %s24
      %p33 = scmp.eq.s32.totalorder %s16, 3
      %p34 = por %p32, %p33
      %p35 = scmp.ne.s32.totalorder %s24, %s25
      %p36 = scmp.eq.s32.totalorder %s16, 0
      %p37 = por %p35, %p36
      %p38 = scmp.ne.s32.totalorder %s24, %s25
      %p39 = scmp.eq.s32.totalorder %s17, 3
      %p40 = por %p38, %p39
      %p42 = scmp.ne.s32.totalorder %s25, %s41
      %p43 = scmp.eq.s32.totalorder %s17, 0
      %p44 = por %p42, %p43
      %s45 = ssub.s32 %s11, %s18
      %p46 = scmp.eq.s32.totalorder %s45, 0
      %s48 = sadd.s32 %s47, 1
      %s49 = scalar_select %p46, %s47, %s48
      %p52 = pneg %p46
      %p53 = scmp.eq.s32.totalorder %s11, 3
      %p54 = por %p52, %p53
      %p55 = scmp.ne.s32.totalorder %s47, %s50
      %p56 = scmp.eq.s32.totalorder %s11, 0
      %p57 = por %p55, %p56
      %p58 = scmp.ne.s32.totalorder %s47, %s50
      %p59 = scmp.eq.s32.totalorder %s16, 3
      %p60 = por %p58, %p59
      %p61 = scmp.ne.s32.totalorder %s50, %s51
      %p62 = scmp.eq.s32.totalorder %s16, 0
      %p63 = por %p61, %p62
      %p64 = scmp.ne.s32.totalorder %s50, %s51
      %p65 = scmp.eq.s32.totalorder %s17, 3
      %p66 = por %p64, %p65
      %p68 = scmp.ne.s32.totalorder %s51, %s67
      %p69 = scmp.eq.s32.totalorder %s17, 0
      %p70 = por %p68, %p69
      %s71 = ssub.s32 %s11, %s18
      %p72 = scmp.eq.s32.totalorder %s71, 0
      %s74 = sadd.s32 %s73, 1
      %s75 = scalar_select %p72, %s73, %s74
      %p78 = pneg %p72
      %p79 = scmp.eq.s32.totalorder %s11, 3
      %p80 = por %p78, %p79
      %p81 = scmp.ne.s32.totalorder %s73, %s76
      %p82 = scmp.eq.s32.totalorder %s11, 0
      %p83 = por %p81, %p82
      %p84 = scmp.ne.s32.totalorder %s73, %s76
      %p85 = scmp.eq.s32.totalorder %s16, 3
      %p86 = por %p84, %p85
      %p87 = scmp.ne.s32.totalorder %s76, %s77
      %p88 = scmp.eq.s32.totalorder %s16, 0
      %p89 = por %p87, %p88
      %p90 = scmp.ne.s32.totalorder %s76, %s77
      %p91 = scmp.eq.s32.totalorder %s17, 3
      %p92 = por %p90, %p91
      %p94 = scmp.ne.s32.totalorder %s77, %s93
      %p95 = scmp.eq.s32.totalorder %s17, 0
      %p96 = por %p94, %p95
      %p97 = scmp.le.s32.totalorder 1, %s11
      %p98 = scmp.lt.s32.totalorder %s11, 5
      %p99 = pnand %p97, %p98
      %p100 = pneg %p99
      // Predicated region
      $region9: #{tpu_custom_call.1} parent=5 // pred_check
        _
      $region10: #{tpu_custom_call.1} parent=5 // pred_check_branch
        %102 = sbr.rel (%p99) target = $region12
      $region11: #{tpu_custom_call.1} parent=5 // pred_region
        %s103 = ssub.s32 %s11, 1
      $region12: #{tpu_custom_call.1} parent=5 // pred_fallthru
        _
      %p104 = scmp.lt.s32.totalorder %s11, 4
      // Predicated region
      $region13: #{tpu_custom_call.1} parent=5 // pred_check
        %p105 = pneg %p104
      $region14: #{tpu_custom_call.1} parent=5 // pred_check_branch
        %107 = sbr.rel (%p105) target = $region16
      $region15: #{tpu_custom_call.1} parent=5 // pred_region
        // Predicated region
        $region17: #{tpu_custom_call.1} parent=15 // pred_check
          %p108 = pneg %p31
        $region18: #{tpu_custom_call.1} parent=15 // pred_check_branch
          %110 = sbr.rel (%p108) target = $region20
        $region19: #{tpu_custom_call.1} parent=15 // pred_region
          %s111 = smul.u32 16, %s11
          %p112 = scmp.lt.s32.totalorder %s111, 63
          %s113 = scalar_select %p112, %s111, 63
          %s114 = smul.addr %s113, 8
          %s115 = scalar_lea.vmem %s0, %s114
          %s116 = smul.u32 16, %s11
        $region20: #{tpu_custom_call.1} parent=15 // pred_fallthru
          _
        // Predicated region
        $region21: #{tpu_custom_call.1} parent=15 // pred_check
          %p117 = pneg %p57
        $region22: #{tpu_custom_call.1} parent=15 // pred_check_branch
          %119 = sbr.rel (%p117) target = $region24
        $region23: #{tpu_custom_call.1} parent=15 // pred_region
          %s120 = smul.u32 16, %s11
          %p121 = scmp.lt.s32.totalorder %s120, 63
          %s122 = scalar_select %p121, %s120, 63
          %s123 = smul.addr %s122, 8
          %s124 = scalar_lea.vmem %s1, %s123
          %s125 = smul.u32 16, %s11
        $region24: #{tpu_custom_call.1} parent=15 // pred_fallthru
          _
      $region16: #{tpu_custom_call.1} parent=5 // pred_fallthru
        _
      %p126 = scmp.le.s32.totalorder 1, %s11
      %p127 = scmp.lt.s32.totalorder %s11, 5
      %p128 = pnand %p126, %p127
      %p129 = pneg %p128
      // Predicated region
      $region25: #{tpu_custom_call.1} parent=5 // pred_check
        _
      $region26: #{tpu_custom_call.1} parent=5 // pred_check_branch
        %131 = sbr.rel (%p128) target = $region28
      $region27: #{tpu_custom_call.1} parent=5 // pred_region
        %s132 = ssub.s32 %s11, 1
        %s133 = smul.u32 16, %s16
        %p134 = scmp.lt.s32.totalorder %s133, 63
        %s135 = scalar_select %p134, %s133, 63
        %s136 = smul.addr %s135, 8
        %s137 = scalar_lea.vmem %s0, %s136
        %p138 = pneg %p37
        %p139 = pneg %p34
        %s140 = smul.u32 16, %s16
        %p141 = scmp.lt.s32.totalorder %s140, 63
        %s142 = scalar_select %p141, %s140, 63
        %s143 = smul.addr %s142, 8
        %s144 = scalar_lea.vmem %s1, %s143
        %p145 = pneg %p63
        %p146 = pneg %p60
        %p147 = pneg %p89
        %p148 = pneg %p86
        %s149 = sand.u32 %s76, 1
        %s150 = scalar_lea.sflag [#allocation3], %s149
        %s151 = sand.u32 %s76, 1
        %s152 = scalar_lea.vmem [#allocation2], %s151
        %s153 = smul.u32 16, %s16
        %p154 = scmp.lt.s32.totalorder %s153, 63
        %s155 = scalar_select %p154, %s153, 63
        %s156 = smul.addr %s155, 8
        %s157 = scalar_lea.vmem %s0, %s156
        %s158 = smul.u32 16, %s16
        %s159 = smul.u32 16, %s16
        %p160 = scmp.lt.s32.totalorder %s159, 63
        %s161 = scalar_select %p160, %s159, 63
        %s162 = smul.addr %s161, 8
        %s163 = scalar_lea.vmem %s1, %s162
        %s164 = smul.u32 16, %s16
        %v165 = vld [vmem:[%s157] sm:$0xff]
        %v166 = vld [vmem:[%s157 + $0x8] sm:$0xff]
        %v167 = vld [vmem:[%s157 + $0x10] sm:$0xff]
        %v168 = vld [vmem:[%s157 + $0x18] sm:$0xff]
        %v169 = vld [vmem:[%s157 + $0x20] sm:$0xff]
        %v170 = vld [vmem:[%s157 + $0x28] sm:$0xff]
        %v171 = vld [vmem:[%s157 + $0x30] sm:$0xff]
        %v172 = vld [vmem:[%s157 + $0x38] sm:$0xff]
        %v173 = vld [vmem:[%s157 + $0x40] sm:$0xff]
        %v174 = vld [vmem:[%s157 + $0x48] sm:$0xff]
        %v175 = vld [vmem:[%s157 + $0x50] sm:$0xff]
        %v176 = vld [vmem:[%s157 + $0x58] sm:$0xff]
        %v177 = vld [vmem:[%s157 + $0x60] sm:$0xff]
        %v178 = vld [vmem:[%s157 + $0x68] sm:$0xff]
        %v179 = vld [vmem:[%s157 + $0x70] sm:$0xff]
        %v180 = vld [vmem:[%s157 + $0x78] sm:$0xff]
        %v181 = vld [vmem:[%s163] sm:$0xff]
        %v182 = vld [vmem:[%s163 + $0x8] sm:$0xff]
        %v183 = vld [vmem:[%s163 + $0x10] sm:$0xff]
        %v184 = vld [vmem:[%s163 + $0x18] sm:$0xff]
        %v185 = vld [vmem:[%s163 + $0x20] sm:$0xff]
        %v186 = vld [vmem:[%s163 + $0x28] sm:$0xff]
        %v187 = vld [vmem:[%s163 + $0x30] sm:$0xff]
        %v188 = vld [vmem:[%s163 + $0x38] sm:$0xff]
        %v189 = vld [vmem:[%s163 + $0x40] sm:$0xff]
        %v190 = vld [vmem:[%s163 + $0x48] sm:$0xff]
        %v191 = vld [vmem:[%s163 + $0x50] sm:$0xff]
        %v192 = vld [vmem:[%s163 + $0x58] sm:$0xff]
        %v193 = vld [vmem:[%s163 + $0x60] sm:$0xff]
        %v194 = vld [vmem:[%s163 + $0x68] sm:$0xff]
        %v195 = vld [vmem:[%s163 + $0x70] sm:$0xff]
        %v196 = vld [vmem:[%s163 + $0x78] sm:$0xff]
        %197 = vxpose.xlu0.b32.start [1/16] %v165, 128
        %198 = vxpose.xlu0.b32.cont [2/16] %v166, 128
        %199 = vxpose.xlu0.b32.cont [3/16] %v167, 128
        %200 = vxpose.xlu0.b32.cont [4/16] %v168, 128
        %201 = vxpose.xlu0.b32.cont [5/16] %v169, 128
        %202 = vxpose.xlu0.b32.cont [6/16] %v170, 128
        %203 = vxpose.xlu0.b32.cont [7/16] %v171, 128
        %204 = vxpose.xlu0.b32.cont [8/16] %v172, 128
        %205 = vxpose.xlu0.b32.cont [9/16] %v173, 128
        %206 = vxpose.xlu0.b32.cont [10/16] %v174, 128
        %207 = vxpose.xlu0.b32.cont [11/16] %v175, 128
        %208 = vxpose.xlu0.b32.cont [12/16] %v176, 128
        %209 = vxpose.xlu0.b32.cont [13/16] %v177, 128
        %210 = vxpose.xlu0.b32.cont [14/16] %v178, 128
        %211 = vxpose.xlu0.b32.cont [15/16] %v179, 128
        %212 = vxpose.xlu0.b32.end [16/16] %v180, 128
        %v213 = vpop.trf.xlu0
        %v214 = vpop.trf.xlu0
        %v215 = vpop.trf.xlu0
        %v216 = vpop.trf.xlu0
        %v217 = vpop.trf.xlu0
        %v218 = vpop.trf.xlu0
        %v219 = vpop.trf.xlu0
        %v220 = vpop.trf.xlu0
        %v221 = vpop.trf.xlu0
        %v222 = vpop.trf.xlu0
        %v223 = vpop.trf.xlu0
        %v224 = vpop.trf.xlu0
        %v225 = vpop.trf.xlu0
        %v226 = vpop.trf.xlu0
        %v227 = vpop.trf.xlu0
        %v228 = vpop.trf.xlu0
        %229 = vxpose.xlu0.b32.start [1/16] %v181, 128
        %230 = vxpose.xlu0.b32.cont [2/16] %v182, 128
        %231 = vxpose.xlu0.b32.cont [3/16] %v183, 128
        %232 = vxpose.xlu0.b32.cont [4/16] %v184, 128
        %233 = vxpose.xlu0.b32.cont [5/16] %v185, 128
        %234 = vxpose.xlu0.b32.cont [6/16] %v186, 128
        %235 = vxpose.xlu0.b32.cont [7/16] %v187, 128
        %236 = vxpose.xlu0.b32.cont [8/16] %v188, 128
        %237 = vxpose.xlu0.b32.cont [9/16] %v189, 128
        %238 = vxpose.xlu0.b32.cont [10/16] %v190, 128
        %239 = vxpose.xlu0.b32.cont [11/16] %v191, 128
        %240 = vxpose.xlu0.b32.cont [12/16] %v192, 128
        %241 = vxpose.xlu0.b32.cont [13/16] %v193, 128
        %242 = vxpose.xlu0.b32.cont [14/16] %v194, 128
        %243 = vxpose.xlu0.b32.cont [15/16] %v195, 128
        %244 = vxpose.xlu0.b32.end [16/16] %v196, 128
        %v245 = vpop.trf.xlu0
        %v246 = vpop.trf.xlu0
        %v247 = vpop.trf.xlu0
        %v248 = vpop.trf.xlu0
        %v249 = vpop.trf.xlu0
        %v250 = vpop.trf.xlu0
        %v251 = vpop.trf.xlu0
        %v252 = vpop.trf.xlu0
        %v253 = vpop.trf.xlu0
        %v254 = vpop.trf.xlu0
        %v255 = vpop.trf.xlu0
        %v256 = vpop.trf.xlu0
        %v257 = vpop.trf.xlu0
        %v258 = vpop.trf.xlu0
        %v259 = vpop.trf.xlu0
        %v260 = vpop.trf.xlu0
        %v261 = vmax.f32 %v245, %v246
        %v262 = vmax.f32 %v247, %v248
        %v263 = vmax.f32 %v261, %v262
        %v264 = vrot.slane %v263, 4
        %v265 = vmax.f32 %v263, %v264
        %v266 = vrot.slane %v265, 2
        %v267 = vmax.f32 %v265, %v266
        %v268 = vrot.slane %v267, 1
        %v269 = vmax.f32 %v267, %v268
        %v270 = vsub.f32 %v245, %v269
        %v271 = vsub.f32 %v246, %v269
        %v272 = vsub.f32 %v247, %v269
        %v273 = vsub.f32 %v248, %v269
        %v274 = vmul.f32 %v270, 1.442695
        %v275 = vpow.pop %v274
        %v276 = vmul.f32 %v271, 1.442695
        %v277 = vpow.pop %v276
        %v278 = vmul.f32 %v272, 1.442695
        %v279 = vpow.pop %v278
        %v280 = vmul.f32 %v273, 1.442695
        %v281 = vpow.pop %v280
        %v282 = vadd.f32 %v275, %v277
        %v283 = vadd.f32 %v282, %v279
        %v284 = vadd.f32 %v283, %v281
        %v285 = vrot.slane %v284, 4
        %v286 = vadd.f32 %v284, %v285
        %v287 = vrot.slane %v286, 2
        %v288 = vadd.f32 %v286, %v287
        %v289 = vrot.slane %v288, 1
        %v290 = vadd.f32 %v288, %v289
        %v291 = vlog2.pop %v290
        %v292 = vmul.f32 %v291, 0.6931472
        %v293 = vsub.f32 %v270, %v292
        %v294 = vsub.f32 %v271, %v292
        %v295 = vsub.f32 %v272, %v292
        %v296 = vsub.f32 %v273, %v292
        %v297 = vmax.f32 %v213, %v214
        %v298 = vmax.f32 %v215, %v216
        %v299 = vmax.f32 %v297, %v298
        %v300 = vrot.slane %v299, 4
        %v301 = vmax.f32 %v299, %v300
        %v302 = vrot.slane %v301, 2
        %v303 = vmax.f32 %v301, %v302
        %v304 = vrot.slane %v303, 1
        %v305 = vmax.f32 %v303, %v304
        %v306 = vsub.f32 %v213, %v305
        %v307 = vsub.f32 %v214, %v305
        %v308 = vsub.f32 %v215, %v305
        %v309 = vsub.f32 %v216, %v305
        %v310 = vmul.f32 %v306, 1.442695
        %v311 = vpow.pop %v310
        %v312 = vmul.f32 %v307, 1.442695
        %v313 = vpow.pop %v312
        %v314 = vmul.f32 %v308, 1.442695
        %v315 = vpow.pop %v314
        %v316 = vmul.f32 %v309, 1.442695
        %v317 = vpow.pop %v316
        %v318 = vadd.f32 %v311, %v313
        %v319 = vadd.f32 %v318, %v315
        %v320 = vadd.f32 %v319, %v317
        %v321 = vrot.slane %v320, 4
        %v322 = vadd.f32 %v320, %v321
        %v323 = vrot.slane %v322, 2
        %v324 = vadd.f32 %v322, %v323
        %v325 = vrot.slane %v324, 1
        %v326 = vadd.f32 %v324, %v325
        %v327 = vmul.f32 %v326, 0.0001
        %v328 = vadd.f32 %v311, %v327
        %v329 = vadd.f32 %v313, %v327
        %v330 = vadd.f32 %v315, %v327
        %v331 = vadd.f32 %v317, %v327
        %v332 = vlog2.pop %v328
        %v333 = vmul.f32 %v332, 0.6931472
        %v334 = vlog2.pop %v329
        %v335 = vmul.f32 %v334, 0.6931472
        %v336 = vlog2.pop %v330
        %v337 = vmul.f32 %v336, 0.6931472
        %v338 = vlog2.pop %v331
        %v339 = vmul.f32 %v338, 0.6931472
        %v340 = vlog2.pop %v326
        %v341 = vmul.f32 %v340, 0.6931472
        %v342 = vsub.f32 %v333, %v341
        %v343 = vsub.f32 %v335, %v341
        %v344 = vsub.f32 %v337, %v341
        %v345 = vsub.f32 %v339, %v341
        %v346 = vsub.f32 %v293, %v342
        %v347 = vsub.f32 %v294, %v343
        %v348 = vsub.f32 %v295, %v344
        %v349 = vsub.f32 %v296, %v345
        %v350 = vmul.f32 %v275, %v346
        %v351 = vmul.f32 %v277, %v347
        %v352 = vmul.f32 %v279, %v348
        %v353 = vmul.f32 %v281, %v349
        %v354 = vadd.f32 %v350, %v351
        %v355 = vadd.f32 %v354, %v352
        %v356 = vadd.f32 %v355, %v353
        %v357 = vrot.slane %v356, 4
        %v358 = vadd.f32 %v356, %v357
        %v359 = vrot.slane %v358, 2
        %v360 = vadd.f32 %v358, %v359
        %v361 = vrot.slane %v360, 1
        %v362 = vadd.f32 %v360, %v361
        %v363 = vrcp.pop %v290
        %v364 = vmul.f32 %v362, %v363
        %365 = vst [vmem:[%s152] sm:$0x1] %v364
        %s366 = sand.u32 %s76, 1
        %s367 = scalar_lea.sflag [#allocation3], %s366
        %s368 = sand.u32 %s76, 1
        %s369 = scalar_lea.vmem [#allocation2], %s368
        // Predicated region
        $region29: #{tpu_custom_call.1} parent=27 // pred_check
          %p370 = pneg %p86
        $region30: #{tpu_custom_call.1} parent=27 // pred_check_branch
          %372 = sbr.rel (%p370) target = $region32
        $region31: #{tpu_custom_call.1} parent=27 // pred_region
          %s374 = ssub.s32 16, 16
          %375 = vsyncadd %s367, %s374
          %s376 = smul.addr %s16, 16
          %s377 = scalar_lea.hbm %s2, %s376
          %s379 = sshll.u32 %s369, 4
          %s380 = int_to_ptr.vmem [resolvable:$true] %s379
          %382 = dma.vmem_to_hbm [thread:$0]  %s380, 16, %s377, %s367
        $region32: #{tpu_custom_call.1} parent=27 // pred_fallthru
          _
      $region28: #{tpu_custom_call.1} parent=5 // pred_fallthru
        _
      %p383 = scmp.le.s32.totalorder 2, %s11
      // Predicated region
      $region33: #{tpu_custom_call.1} parent=5 // pred_check
        %p384 = pneg %p383
      $region34: #{tpu_custom_call.1} parent=5 // pred_check_branch
        %386 = sbr.rel (%p384) target = $region36
      $region35: #{tpu_custom_call.1} parent=5 // pred_region
        %s387 = ssub.s32 %s11, 2
        // Predicated region
        $region37: #{tpu_custom_call.1} parent=35 // pred_check
          %p388 = pneg %p92
        $region38: #{tpu_custom_call.1} parent=35 // pred_check_branch
          %390 = sbr.rel (%p388) target = $region40
        $region39: #{tpu_custom_call.1} parent=35 // pred_region
          %s391 = sand.u32 %s77, 1
          %s392 = scalar_lea.sflag [#allocation3], %s391
          %s393 = sand.u32 %s77, 1
          %s394 = scalar_lea.vmem [#allocation2], %s393
          %395 = dma.done %s392, 16
        $region40: #{tpu_custom_call.1} parent=35 // pred_fallthru
          _
      $region36: #{tpu_custom_call.1} parent=5 // pred_fallthru
        _
    $region6: #{tpu_custom_call.1} parent=1 // loop_footer
      %s15 = sadd.s32 1, %s11
    $region7: #{tpu_custom_call.1} parent=1 // loop_footer_branch
      %10 = sbr.rel target = $region3
    $region8: #{tpu_custom_call.1} parent=1 // loop_exit
      _
    %396 = vsyncpa [#allocation3], 1
    %s397 = scalar_lea.sflag [#allocation3], 1
    %398 = vsyncpa %s397, 1

</llo_original>
